<compile_context>
chip_gen: v7x
topology: tpu7x:2x2x1
jax: 0.10.0
libtpu: 0.0.40
codegen_flags: <defaults>
</compile_context>

<pallas_src>
import jax
import jax.numpy as jnp
from jax.experimental import pallas as pl
from jax.experimental.pallas import tpu as pltpu


# ------------------------------------------------------------------
# VMEM budget / tiling helpers
# ------------------------------------------------------------------
def _round_up(x, m):
    return ((x + m - 1) // m) * m


def _vmem_budget_bytes():
    """Generation-aware VMEM budget: ~80% of physical capacity
    (~51 MiB on v7x's 64 MiB per TC, ~102 MiB on v5e/v6e's 128 MiB)."""
    try:
        cap = int(pltpu.get_tpu_info().vmem_capacity_bytes)
    except Exception:
        cap = 64 << 20          # conservative fallback (v7x per-core VMEM)
    return (cap * 4) // 5


def _pick_tile(n, stream_bytes_per_cand, out_bytes_per_cand, resident_bytes,
               budget, target_stream_bytes=8 << 20):
    """Tile (multiple of 128 lanes) along the candidate axis of the streamed
    table.  Aim for ~8 MiB of table per grid step so the ~0.35 us fixed
    per-step overhead is amortized, bounded by the VMEM budget (streamed and
    output blocks double-buffered)."""
    per_cand = 2 * (stream_bytes_per_cand + out_bytes_per_cand)
    avail = budget - 2 * resident_bytes
    tn_fit = avail // per_cand if avail > 0 else 128
    tn = min(tn_fit, max(128, target_stream_bytes // stream_bytes_per_cand))
    tn = max(128, (tn // 128) * 128)
    # No forced multi-step split: on single-TC v5e/v6e the biggest tile that
    # fits wins; on v7x, production-size tables still yield many steps for
    # megacore sharding.
    return min(tn, _round_up(n, 128))


# ------------------------------------------------------------------
# Generic streamed scoring kernel:
#   o[b, n] = sum_k vec[b, k] * T[k, n]
# vec is grid-invariant (per-triple interaction), T streamed lane-dense.
# ------------------------------------------------------------------
def _score_kernel(vec_ref, table_ref, o_ref):
    # One streamed MXU matmul per grid step; bf16 operands, f32 accumulation.
    o_ref[...] = jnp.dot(vec_ref[...], table_ref[...],
                         preferred_element_type=jnp.float32)


_SINGLE_BUFFER_OK = None   # cached: does this jax build accept pl.Buffered(1)?


def streamed_scores(vec, table_t):
    """scores[b, n] = sum_k vec[b, k] * table_t[k, n], streaming the
    feature-major table through VMEM in lane-dense (K, tn) tiles."""
    global _SINGLE_BUFFER_OK
    B, K = vec.shape
    Kt, N = table_t.shape
    assert Kt == K
    item = table_t.dtype.itemsize
    budget = _vmem_budget_bytes()
    resident = B * K * vec.dtype.itemsize
    tn = _pick_tile(N, K * item, B * 4, resident, budget)
    grid = (pl.cdiv(N, tn),)

    need = 2 * (tn * K * item + tn * B * 4) + 2 * resident
    params = pltpu.CompilerParams(
        # TODO(synk): on v7x confirm megacore sharding of this axis with a
        # profile; switch to pltpu.CORE_PARALLEL / core_map if single-core.
        dimension_semantics=("parallel",),
        vmem_limit_bytes=int(min(max(2 * need, 32 << 20), budget)))

    def build(pipeline_mode):
        if pipeline_mode is None:
            vec_spec = pl.BlockSpec((B, K), lambda j: (0, 0))
        else:
            # Grid-invariant input: single buffer, no point double-buffering.
            vec_spec = pl.BlockSpec((B, K), lambda j: (0, 0),
                                    pipeline_mode=pipeline_mode)
        return pl.pallas_call(
            _score_kernel,
            out_shape=jax.ShapeDtypeStruct((B, N), jnp.float32),
            grid=grid,
            in_specs=[vec_spec,
                      pl.BlockSpec((K, tn), lambda j: (0, j))],
            out_specs=pl.BlockSpec((B, tn), lambda j: (0, j)),
            compiler_params=params)

    if _SINGLE_BUFFER_OK is not False:
        try:
            out = build(pl.Buffered(1))(vec, table_t)
            _SINGLE_BUFFER_OK = True
            return out
        except Exception:
            _SINGLE_BUFFER_OK = False
    return build(None)(vec, table_t)


# ------------------------------------------------------------------
# RESCAL forward (mod=None path).  Embedding gathers + tiny per-triple
# interactions are XLA glue; the two big HBM-bound score matmuls are Pallas.
# ------------------------------------------------------------------
def prepare_score_tables(ent_emb, rel_emb):
    """One-time scoring copies: bf16 (halves the dominant HBM stream) and
    feature-major layout so streamed tiles are lane-dense and transpose-free.
    TODO(synk): fp8 (v7x) / int8 (v5e/v6e) per-row-scaled tables would halve
    the stream again; omitted to keep scores close to the f32 reference."""
    return ent_emb.astype(jnp.bfloat16).T, rel_emb.astype(jnp.bfloat16).T


def rescal_forward(x, ent_emb, rel_emb, ent_emb_t_bf16, rel_emb_t_bf16, rank):
    """RESCAL.forward, mod=None path.  Arithmetic intensity is ~B flops per
    streamed table byte, so larger B per call is essentially free throughput
    until B approaches ~250 (v5e) / ~680 (v6e) / ~310 (v7x)."""
    lhs = ent_emb[x[:, 0]]                                     # (B, R)
    rel = rel_emb[x[:, 1]].reshape(-1, rank, rank)             # (B, R, R)
    rhs = ent_emb[x[:, 2]]                                     # (B, R)
    # Per-triple interactions hoisted out of the streaming loops (O(B*R^2)):
    hr = jnp.einsum('br,brk->bk', lhs, rel)                    # (B, R)
    lr = (lhs[:, :, None] * rhs[:, None, :]).reshape(-1, rank * rank)  # (B,R*R)
    # Each score kernel is then one bf16 matmul per streamed table tile.
    # TODO(synk): scores could be emitted in bf16 (~25% more HBM saving on the
    # entity kernel) if downstream ranking tolerates it; kept f32 to match
    # the PyTorch reference output dtype.
    scores_ent = streamed_scores(hr.astype(jnp.bfloat16), ent_emb_t_bf16)
    scores_rel = streamed_scores(lr.astype(jnp.bfloat16), rel_emb_t_bf16)
    return scores_ent, scores_rel, [(lhs, rel, rhs)]


def _xavier_uniform(key, shape):
    fan_out, fan_in = shape
    bound = (6.0 / (fan_in + fan_out)) ** 0.5
    return jax.random.uniform(key, shape, jnp.float32, -bound, bound)


if __name__ == "__main__":
    # sizes = (n_ent, n_rel, n_ent), rank R, batch B.  n_ent deliberately not
    # a multiple of 128 to exercise the ragged / padded-tile path.
    n_ent, n_rel, rank, B = 320, 128, 32, 16

    key = jax.random.PRNGKey(0)
    k_ent, k_rel, k_h, k_r, k_t = jax.random.split(key, 5)

    ent_emb = _xavier_uniform(k_ent, (n_ent, rank))            # embeddings[0]
    rel_emb = _xavier_uniform(k_rel, (n_rel, rank * rank))     # embeddings[1]
    ent_emb_t_bf16, rel_emb_t_bf16 = prepare_score_tables(ent_emb, rel_emb)

    # Synthetic query triples (lhs, rel, rhs).
    x = jnp.stack([
        jax.random.randint(k_h, (B,), 0, n_ent),
        jax.random.randint(k_r, (B,), 0, n_rel),
        jax.random.randint(k_t, (B,), 0, n_ent),
    ], axis=1).astype(jnp.int32)                               # (B, 3)

    s_ent, s_rel, [(lhs, rel, rhs)] = rescal_forward(
        x, ent_emb, rel_emb, ent_emb_t_bf16, rel_emb_t_bf16, rank)
    jax.block_until_ready((s_ent, s_rel, lhs, rel, rhs))

    # Pure-JAX reference.
    lhs_r = ent_emb[x[:, 0]]
    rel_r = rel_emb[x[:, 1]].reshape(-1, rank, rank)
    rhs_r = ent_emb[x[:, 2]]
    hr_r = jnp.einsum('br,brk->bk', lhs_r, rel_r)
    lr_r = (lhs_r[:, :, None] * rhs_r[:, None, :]).reshape(-1, rank * rank)

    # Reference with the same bf16-rounded operands as the kernels.
    ref_ent = hr_r.astype(jnp.bfloat16).astype(jnp.float32) @ \
        ent_emb_t_bf16.astype(jnp.float32)
    ref_rel = lr_r.astype(jnp.bfloat16).astype(jnp.float32) @ \
        rel_emb_t_bf16.astype(jnp.float32)

    assert s_ent.shape == (B, n_ent) and s_rel.shape == (B, n_rel)
    assert jnp.allclose(s_ent, ref_ent, atol=2e-3, rtol=2e-2)
    assert jnp.allclose(s_rel, ref_rel, atol=2e-3, rtol=2e-2)
    # Loose sanity check against the full-f32 reference (bf16 stream is an
    # intentional ~1e-2-relative accuracy/bandwidth trade-off, not exact
    # equivalence to the PyTorch f32 math).
    assert jnp.allclose(s_ent, hr_r @ ent_emb.T, atol=2e-2, rtol=2e-1)
    assert jnp.allclose(s_rel, lr_r @ rel_emb.T, atol=2e-2, rtol=2e-1)
    assert jnp.allclose(lhs, lhs_r) and jnp.allclose(rhs, rhs_r)
    assert jnp.allclose(rel, rel_r)

    print("KERNEL_OK")
</pallas_src>

<mosaic_0001>
module attributes {stable_mosaic.version = 11 : i64} {
  func.func @_score_kernel(%arg0: i32, %arg1: memref<16x32xbf16, #tpu.memory_space<vmem>>, %arg2: memref<32x384xbf16, #tpu.memory_space<vmem>>, %arg3: memref<16x384xf32, #tpu.memory_space<vmem>>) attributes {dimension_semantics = [#tpu.dimension_semantics<parallel>], iteration_bounds = array<i64: 1>, scalar_prefetch = 0 : i64, scratch_operands = 0 : i64, tpu.core_type = #tpu.core_type<tc>, window_params = [{pipeline_mode = #tpu.pipeline_mode<synchronous>, transform_indices = @transform_0, window_bounds = array<i64: 16, 32>}, {transform_indices = @transform_1, window_bounds = array<i64: 32, 384>}, {transform_indices = @transform_2, window_bounds = array<i64: 16, 384>}]} {
    %c0 = arith.constant 0 : index
    %c0_0 = arith.constant 0 : index
    %0 = vector.load %arg1[%c0, %c0_0] : memref<16x32xbf16, #tpu.memory_space<vmem>>, vector<16x32xbf16>
    %c0_1 = arith.constant 0 : index
    %c0_2 = arith.constant 0 : index
    %1 = vector.load %arg2[%c0_1, %c0_2] : memref<32x384xbf16, #tpu.memory_space<vmem>>, vector<32x384xbf16>
    %cst = arith.constant dense<0.000000e+00> : vector<16x384xf32>
    %2 = tpu.matmul %0, %1, %cst {dimension_numbers = #tpu.dot_dimension_numbers<[1], [0], [0], [1], [0, 0, 1, 1], [], []>} : vector<16x32xbf16>, vector<32x384xbf16>, vector<16x384xf32> -> vector<16x384xf32>
    %c0_3 = arith.constant 0 : index
    %c0_4 = arith.constant 0 : index
    %3 = vector.load %arg3[%c0_3, %c0_4] : memref<16x384xf32, #tpu.memory_space<vmem>>, vector<16x384xf32>
    tpu.vector_store %arg3[%c0_3, %c0_4], %2 {strides = array<i32>} : memref<16x384xf32, #tpu.memory_space<vmem>>, vector<16x384xf32>,
    return
  }
  func.func @transform_0(%arg0: i32) -> (i32, i32) {
    %c0_i32 = arith.constant 0 : i32
    %c0_i32_0 = arith.constant 0 : i32
    %c0_i32_1 = arith.constant 0 : i32
    return %c0_i32, %c0_i32_0 : i32, i32
  }
  func.func @transform_1(%arg0: i32) -> (i32, i32) {
    %c0_i32 = arith.constant 0 : i32
    %c0_i32_0 = arith.constant 0 : i32
    return %c0_i32, %arg0 : i32, i32
  }
  func.func @transform_2(%arg0: i32) -> (i32, i32) {
    %c0_i32 = arith.constant 0 : i32
    %c0_i32_0 = arith.constant 0 : i32
    return %c0_i32, %arg0 : i32, i32
  }
}

module attributes {stable_mosaic.version = 11 : i64} {
  func.func @_score_kernel(%arg0: i32, %arg1: memref<16x32xbf16, #tpu.memory_space<vmem>>, %arg2: memref<32x384xbf16, #tpu.memory_space<vmem>>, %arg3: memref<16x384xf32, #tpu.memory_space<vmem>>) attributes {dimension_semantics = [#tpu.dimension_semantics<parallel>], iteration_bounds = array<i64: 1>, scalar_prefetch = 0 : i64, scratch_operands = 0 : i64, tpu.core_type = #tpu.core_type<tc>, window_params = [{pipeline_mode = #tpu.pipeline_mode<synchronous>, transform_indices = @transform_0, window_bounds = array<i64: 16, 32>}, {transform_indices = @transform_1, window_bounds = array<i64: 32, 384>}, {transform_indices = @transform_2, window_bounds = array<i64: 16, 384>}]} {
    %c0 = arith.constant 0 : index
    %c0_0 = arith.constant 0 : index
    %0 = vector.load %arg1[%c0, %c0_0] : memref<16x32xbf16, #tpu.memory_space<vmem>>, vector<16x32xbf16>
    %c0_1 = arith.constant 0 : index
    %c0_2 = arith.constant 0 : index
    %1 = vector.load %arg2[%c0_1, %c0_2] : memref<32x384xbf16, #tpu.memory_space<vmem>>, vector<32x384xbf16>
    %cst = arith.constant dense<0.000000e+00> : vector<16x384xf32>
    %2 = tpu.matmul %0, %1, %cst {dimension_numbers = #tpu.dot_dimension_numbers<[1], [0], [0], [1], [0, 0, 1, 1], [], []>} : vector<16x32xbf16>, vector<32x384xbf16>, vector<16x384xf32> -> vector<16x384xf32>
    %c0_3 = arith.constant 0 : index
    %c0_4 = arith.constant 0 : index
    %3 = vector.load %arg3[%c0_3, %c0_4] : memref<16x384xf32, #tpu.memory_space<vmem>>, vector<16x384xf32>
    tpu.vector_store %arg3[%c0_3, %c0_4], %2 {strides = array<i32>} : memref<16x384xf32, #tpu.memory_space<vmem>>, vector<16x384xf32>,
    return
  }
  func.func @transform_0(%arg0: i32) -> (i32, i32) {
    %c0_i32 = arith.constant 0 : i32
    %c0_i32_0 = arith.constant 0 : i32
    %c0_i32_1 = arith.constant 0 : i32
    return %c0_i32, %c0_i32_0 : i32, i32
  }
  func.func @transform_1(%arg0: i32) -> (i32, i32) {
    %c0_i32 = arith.constant 0 : i32
    %c0_i32_0 = arith.constant 0 : i32
    return %c0_i32, %arg0 : i32, i32
  }
  func.func @transform_2(%arg0: i32) -> (i32, i32) {
    %c0_i32 = arith.constant 0 : i32
    %c0_i32_0 = arith.constant 0 : i32
    return %c0_i32, %arg0 : i32, i32
  }
}

</mosaic_0001>

<llo_original>
// kernel: tpu_custom_call.1
$region0: #{tpu_custom_call.1}
  #allocation0 [shape = 'u32[]', space=smem, size = 0x4, offset = 0x4, fixed_abs, tag = 'smem constant byte address 0x4 - core index']
  #allocation1 [shape = 'u32[144,128]{1,0:T(1,128)}', space=vmem, size = 0x12000, scoped, tag = 'internal scratch']
  %s0 = inlined_call_operand.hbm [shape: bf16[16,32], index: 0, kind: input, shape index: {}]
  %s1 = inlined_call_operand.hbm [shape: bf16[32,320], index: 1, kind: input, shape index: {}]
  %s2 = inlined_call_operand.hbm [shape: f32[16,320], index: 2, kind: output, shape index: {}]
  %s3 = sld [smem:[#allocation0]]
  $region26: #{tpu_custom_call.1} parent=0
    _
  %s5 = ssub.s32 1, %s3
  %s6 = scalar_select 0, %s5, %s3
  $region1: #{tpu_custom_call.1} parent=0
    #allocation2 [shape = 'u8[4096]{0}', space=vmem, size = 0x1000, scoped, tag = 'input window, operand 0, single buffered']
    #allocation3 [shape = 's32[1]{0}', space=sflag, size = 0x4, scoped, tag = 'scoped memory for tpu_custom_call.1']
    #allocation4 [shape = 's32[1]{0}', space=sflag, size = 0x4, scoped, tag = 'scoped memory for tpu_custom_call.1']
    #allocation5 [shape = 'u8[24576]{0}', space=vmem, size = 0x6000, scoped, tag = 'input window, operand 1, single buffered']
    #allocation6 [shape = 's32[1]{0}', space=sflag, size = 0x4, scoped, tag = 'scoped memory for tpu_custom_call.1']
    #allocation7 [shape = 'u8[24576]{0}', space=vmem, size = 0x6000, scoped, tag = 'output window, operand 0, single buffered']
    %7 = vsyncpa [#allocation3], 0
    %8 = vsyncpa [#allocation6], 0
    %9 = vsyncpa [#allocation4], 0
    // Predicated region
    $region2: #{tpu_custom_call.1} parent=1 // pred_check
      _
    $region3: #{tpu_custom_call.1} parent=1 // pred_check_branch
      %11 = sbr.rel (0) target = $region5
    $region4: #{tpu_custom_call.1} parent=1 // pred_region
      %s13 = ssub.s32 128, 128
      %14 = vsyncadd [#allocation3], %s13
      %s15 = sshll.u32 [#allocation2], 4
      %s16 = int_to_ptr.vmem [resolvable:$true] %s15
      %21 = dma.hbm_to_vmem [thread:$0]  %s0, 128, %s16, [#allocation3], 64, 64, 4
    $region5: #{tpu_custom_call.1} parent=1 // pred_fallthru
      _
    // Predicated region
    $region6: #{tpu_custom_call.1} parent=1 // pred_check
      _
    $region7: #{tpu_custom_call.1} parent=1 // pred_check_branch
      %23 = sbr.rel (0) target = $region9
    $region8: #{tpu_custom_call.1} parent=1 // pred_region
      %s25 = ssub.s32 768, 768
      %26 = vsyncadd [#allocation6], %s25
      %s27 = sshll.u32 [#allocation5], 4
      %s28 = int_to_ptr.vmem [resolvable:$true] %s27
      %33 = dma.hbm_to_vmem [thread:$0]  %s1, 768, %s28, [#allocation6], 192, 192, 12
    $region9: #{tpu_custom_call.1} parent=1 // pred_fallthru
      _
    // Predicated region
    $region10: #{tpu_custom_call.1} parent=1 // pred_check
      _
    $region11: #{tpu_custom_call.1} parent=1 // pred_check_branch
      %35 = sbr.rel (0) target = $region13
    $region12: #{tpu_custom_call.1} parent=1 // pred_region
      %36 = dma.done [#allocation3], 128
    $region13: #{tpu_custom_call.1} parent=1 // pred_fallthru
      _
    // Predicated region
    $region14: #{tpu_custom_call.1} parent=1 // pred_check
      _
    $region15: #{tpu_custom_call.1} parent=1 // pred_check_branch
      %38 = sbr.rel (0) target = $region17
    $region16: #{tpu_custom_call.1} parent=1 // pred_region
      %39 = dma.done [#allocation6], 768
    $region17: #{tpu_custom_call.1} parent=1 // pred_fallthru
      _
    %v41 = vld [vmem:[#allocation2] sm:$0xf]
    %v42 = vld [vmem:[#allocation2 + $0x4] sm:$0xf]
    %v43 = vld [vmem:[#allocation5] sm:$0xff]
    %v44 = vld [vmem:[#allocation5 + $0x8] sm:$0xf]
    %v45 = vld [vmem:[#allocation5 + $0xc] sm:$0xff]
    %v46 = vld [vmem:[#allocation5 + $0x14] sm:$0xf]
    %v47 = vld [vmem:[#allocation5 + $0x18] sm:$0xff]
    %v48 = vld [vmem:[#allocation5 + $0x20] sm:$0xf]
    %v49 = vld [vmem:[#allocation5 + $0x24] sm:$0xff]
    %v50 = vld [vmem:[#allocation5 + $0x2c] sm:$0xf]
    %v53 = vunpack.c.l.b16 %v41
    %v54 = vunpack.c.l.b16 %v42
    %v55 = vpack.c.b16 %v54, %v53
    %v64 = vunpack.c.l.b16 %v43
    %v65 = vunpack.c.h.b16 %v43
    %v66 = vunpack.c.l.b16 %v44
    %v67 = vunpack.c.l.b16 %v45
    %v68 = vunpack.c.h.b16 %v45
    %v69 = vunpack.c.l.b16 %v46
    %v70 = vunpack.c.l.b16 %v47
    %v71 = vunpack.c.h.b16 %v47
    %v72 = vunpack.c.l.b16 %v48
    %v73 = vunpack.c.l.b16 %v49
    %v74 = vunpack.c.h.b16 %v49
    %v75 = vunpack.c.l.b16 %v50
    %v76 = vpack.c.b16 %v67, %v64
    %v77 = vpack.c.b16 %v68, %v65
    %v78 = vpack.c.b16 %v69, %v66
    %v79 = vpack.c.b16 %v73, %v70
    %v80 = vpack.c.b16 %v74, %v71
    %v81 = vpack.c.b16 %v75, %v72
    %vm88 = vcmask 261120
    %v90 = vsel %vm88, %v55, 0
    %92 = vmatprep.subr.bf16.mxu0 %v77
    %93 = vmatpush1.bf16.msra.mxu0 %v76
    %94 = vmatprep.subr.bf16.mxu0 %v80
    %95 = vmatpush1.bf16.msra.mxu0 %v79
    %96 = vmatprep.subr.bf16.mxu0 0
    %97 = vmatpush1.bf16.msra.mxu0 0
    %98 = vmatprep.subr.bf16.mxu0 0
    %99 = vmatpush1.bf16.msra.mxu0 0
    %100 = vmatprep.subr.bf16.mxu0 0
    %101 = vmatpush1.bf16.msra.mxu0 0
    %102 = vmatprep.subr.bf16.mxu0 0
    %103 = vmatpush1.bf16.msra.mxu0 0
    %104 = vmatprep.subr.bf16.mxu0 0
    %105 = vmatpush1.bf16.msra.mxu0 0
    %106 = vmatprep.subr.bf16.mxu0 0
    %107 = vmatpush1.bf16.msra.mxu0 0
    %108 = vmatprep.subr.bf16.mxu0 0
    %109 = vmatpush1.bf16.msra.mxu0 0
    %110 = vmatprep.subr.bf16.mxu0 0
    %111 = vmatpush1.bf16.msra.mxu0 0
    %112 = vmatprep.subr.bf16.mxu0 0
    %113 = vmatpush1.bf16.msra.mxu0 0
    %114 = vmatprep.subr.bf16.mxu0 0
    %115 = vmatpush1.bf16.msra.mxu0 0
    %116 = vmatprep.subr.bf16.mxu0 0
    %117 = vmatpush1.bf16.msra.mxu0 0
    %118 = vmatprep.subr.bf16.mxu0 0
    %119 = vmatpush1.bf16.msra.mxu0 0
    %120 = vmatprep.subr.bf16.mxu0 0
    %121 = vmatpush1.bf16.msra.mxu0 0
    %122 = vmatprep.subr.bf16.mxu0 0
    %123 = vmatpush1.bf16.msra.mxu0 0
    %124 = vmatprep.mubr.bf16.mxu0 0
    %125 = vmatmul.mubr.bf16.gmra.mrb[0].mxu0 %v90
    %v126 = vpop.f32.mrb[0].mxu0
    %v127 = vadd.f32 0.0, %v126
    %v128 = vpop.f32.mrb[0].mxu0
    %v129 = vadd.f32 0.0, %v128
    %v130 = vpop.f32.mrb[0].mxu0
    %v131 = vadd.f32 0.0, %v130
    %v132 = vpop.f32.mrb[0].mxu0
    %v133 = vadd.f32 0.0, %v132
    %134 = vdwg.mxu0
    %135 = vmatprep.subr.bf16.mxu0 0
    %136 = vmatpush1.bf16.msra.mxu0 %v78
    %137 = vmatprep.subr.bf16.mxu0 0
    %138 = vmatpush1.bf16.msra.mxu0 %v81
    %139 = vmatprep.subr.bf16.mxu0 0
    %140 = vmatpush1.bf16.msra.mxu0 0
    %141 = vmatprep.subr.bf16.mxu0 0
    %142 = vmatpush1.bf16.msra.mxu0 0
    %143 = vmatprep.subr.bf16.mxu0 0
    %144 = vmatpush1.bf16.msra.mxu0 0
    %145 = vmatprep.subr.bf16.mxu0 0
    %146 = vmatpush1.bf16.msra.mxu0 0
    %147 = vmatprep.subr.bf16.mxu0 0
    %148 = vmatpush1.bf16.msra.mxu0 0
    %149 = vmatprep.subr.bf16.mxu0 0
    %150 = vmatpush1.bf16.msra.mxu0 0
    %151 = vmatprep.subr.bf16.mxu0 0
    %152 = vmatpush1.bf16.msra.mxu0 0
    %153 = vmatprep.subr.bf16.mxu0 0
    %154 = vmatpush1.bf16.msra.mxu0 0
    %155 = vmatprep.subr.bf16.mxu0 0
    %156 = vmatpush1.bf16.msra.mxu0 0
    %157 = vmatprep.subr.bf16.mxu0 0
    %158 = vmatpush1.bf16.msra.mxu0 0
    %159 = vmatprep.subr.bf16.mxu0 0
    %160 = vmatpush1.bf16.msra.mxu0 0
    %161 = vmatprep.subr.bf16.mxu0 0
    %162 = vmatpush1.bf16.msra.mxu0 0
    %163 = vmatprep.subr.bf16.mxu0 0
    %164 = vmatpush1.bf16.msra.mxu0 0
    %165 = vmatprep.subr.bf16.mxu0 0
    %166 = vmatpush1.bf16.msra.mxu0 0
    %167 = vmatprep.mubr.bf16.mxu0 0
    %168 = vmatmul.mubr.bf16.gmra.mrb[0].mxu0 %v90
    %v169 = vpop.f32.mrb[0].mxu0
    %v170 = vadd.f32 0.0, %v169
    %v171 = vpop.f32.mrb[0].mxu0
    %v172 = vpop.f32.mrb[0].mxu0
    %v173 = vadd.f32 0.0, %v172
    %v174 = vpop.f32.mrb[0].mxu0
    %175 = vdwg.mxu0
    %176 = vst [vmem:[#allocation7] sm:$0xff] %v127
    %177 = vst [vmem:[#allocation7 + $0x8] sm:$0xff] %v129
    %178 = vst [vmem:[#allocation7 + $0x10] sm:$0xff] %v170
    %179 = vst [vmem:[#allocation7 + $0x18] sm:$0xff] %v131
    %180 = vst [vmem:[#allocation7 + $0x20] sm:$0xff] %v133
    %181 = vst [vmem:[#allocation7 + $0x28] sm:$0xff] %v173
    // Predicated region
    $region18: #{tpu_custom_call.1} parent=1 // pred_check
      _
    $region19: #{tpu_custom_call.1} parent=1 // pred_check_branch
      %183 = sbr.rel (0) target = $region21
    $region20: #{tpu_custom_call.1} parent=1 // pred_region
      %s185 = ssub.s32 768, 768
      %186 = vsyncadd [#allocation4], %s185
      %s187 = sshll.u32 [#allocation7], 4
      %s188 = int_to_ptr.vmem [resolvable:$true] %s187
      %193 = dma.vmem_to_hbm [thread:$0]  %s188, 768, %s2, [#allocation4], 384, 384, 24
    $region21: #{tpu_custom_call.1} parent=1 // pred_fallthru
      _
    // Predicated region
    $region22: #{tpu_custom_call.1} parent=1 // pred_check
      _
    $region23: #{tpu_custom_call.1} parent=1 // pred_check_branch
      %195 = sbr.rel (0) target = $region25
    $region24: #{tpu_custom_call.1} parent=1 // pred_region
      %196 = dma.done [#allocation4], 768
    $region25: #{tpu_custom_call.1} parent=1 // pred_fallthru
      _
    %197 = vsyncpa [#allocation3], 1
    %198 = vsyncpa [#allocation6], 1
    %199 = vsyncpa [#allocation4], 1

// kernel: tpu_custom_call.1
$region0: #{tpu_custom_call.1}
  #allocation0 [shape = 'u32[]', space=smem, size = 0x4, offset = 0x4, fixed_abs, tag = 'smem constant byte address 0x4 - core index']
  #allocation1 [shape = 'u32[144,128]{1,0:T(1,128)}', space=vmem, size = 0x12000, scoped, tag = 'internal scratch']
  %s0 = inlined_call_operand.hbm [shape: bf16[16,32], index: 0, kind: input, shape index: {}]
  %s1 = inlined_call_operand.hbm [shape: bf16[32,320], index: 1, kind: input, shape index: {}]
  %s2 = inlined_call_operand.hbm [shape: f32[16,320], index: 2, kind: output, shape index: {}]
  %s3 = sld [smem:[#allocation0]]
  $region26: #{tpu_custom_call.1} parent=0
    _
  %s5 = ssub.s32 1, %s3
  %s6 = scalar_select 0, %s5, %s3
  $region1: #{tpu_custom_call.1} parent=0
    #allocation2 [shape = 'u8[4096]{0}', space=vmem, size = 0x1000, scoped, tag = 'input window, operand 0, single buffered']
    #allocation3 [shape = 's32[1]{0}', space=sflag, size = 0x4, scoped, tag = 'scoped memory for tpu_custom_call.1']
    #allocation4 [shape = 's32[1]{0}', space=sflag, size = 0x4, scoped, tag = 'scoped memory for tpu_custom_call.1']
    #allocation5 [shape = 'u8[24576]{0}', space=vmem, size = 0x6000, scoped, tag = 'input window, operand 1, single buffered']
    #allocation6 [shape = 's32[1]{0}', space=sflag, size = 0x4, scoped, tag = 'scoped memory for tpu_custom_call.1']
    #allocation7 [shape = 'u8[24576]{0}', space=vmem, size = 0x6000, scoped, tag = 'output window, operand 0, single buffered']
    %7 = vsyncpa [#allocation3], 0
    %8 = vsyncpa [#allocation6], 0
    %9 = vsyncpa [#allocation4], 0
    // Predicated region
    $region2: #{tpu_custom_call.1} parent=1 // pred_check
      _
    $region3: #{tpu_custom_call.1} parent=1 // pred_check_branch
      %11 = sbr.rel (0) target = $region5
    $region4: #{tpu_custom_call.1} parent=1 // pred_region
      %s13 = ssub.s32 128, 128
      %14 = vsyncadd [#allocation3], %s13
      %s15 = sshll.u32 [#allocation2], 4
      %s16 = int_to_ptr.vmem [resolvable:$true] %s15
      %21 = dma.hbm_to_vmem [thread:$0]  %s0, 128, %s16, [#allocation3], 64, 64, 4
    $region5: #{tpu_custom_call.1} parent=1 // pred_fallthru
      _
    // Predicated region
    $region6: #{tpu_custom_call.1} parent=1 // pred_check
      _
    $region7: #{tpu_custom_call.1} parent=1 // pred_check_branch
      %23 = sbr.rel (0) target = $region9
    $region8: #{tpu_custom_call.1} parent=1 // pred_region
      %s25 = ssub.s32 768, 768
      %26 = vsyncadd [#allocation6], %s25
      %s27 = sshll.u32 [#allocation5], 4
      %s28 = int_to_ptr.vmem [resolvable:$true] %s27
      %33 = dma.hbm_to_vmem [thread:$0]  %s1, 768, %s28, [#allocation6], 192, 192, 12
    $region9: #{tpu_custom_call.1} parent=1 // pred_fallthru
      _
    // Predicated region
    $region10: #{tpu_custom_call.1} parent=1 // pred_check
      _
    $region11: #{tpu_custom_call.1} parent=1 // pred_check_branch
      %35 = sbr.rel (0) target = $region13
    $region12: #{tpu_custom_call.1} parent=1 // pred_region
      %36 = dma.done [#allocation3], 128
    $region13: #{tpu_custom_call.1} parent=1 // pred_fallthru
      _
    // Predicated region
    $region14: #{tpu_custom_call.1} parent=1 // pred_check
      _
    $region15: #{tpu_custom_call.1} parent=1 // pred_check_branch
      %38 = sbr.rel (0) target = $region17
    $region16: #{tpu_custom_call.1} parent=1 // pred_region
      %39 = dma.done [#allocation6], 768
    $region17: #{tpu_custom_call.1} parent=1 // pred_fallthru
      _
    %v41 = vld [vmem:[#allocation2] sm:$0xf]
    %v42 = vld [vmem:[#allocation2 + $0x4] sm:$0xf]
    %v43 = vld [vmem:[#allocation5] sm:$0xff]
    %v44 = vld [vmem:[#allocation5 + $0x8] sm:$0xf]
    %v45 = vld [vmem:[#allocation5 + $0xc] sm:$0xff]
    %v46 = vld [vmem:[#allocation5 + $0x14] sm:$0xf]
    %v47 = vld [vmem:[#allocation5 + $0x18] sm:$0xff]
    %v48 = vld [vmem:[#allocation5 + $0x20] sm:$0xf]
    %v49 = vld [vmem:[#allocation5 + $0x24] sm:$0xff]
    %v50 = vld [vmem:[#allocation5 + $0x2c] sm:$0xf]
    %v53 = vunpack.c.l.b16 %v41
    %v54 = vunpack.c.l.b16 %v42
    %v55 = vpack.c.b16 %v54, %v53
    %v64 = vunpack.c.l.b16 %v43
    %v65 = vunpack.c.h.b16 %v43
    %v66 = vunpack.c.l.b16 %v44
    %v67 = vunpack.c.l.b16 %v45
    %v68 = vunpack.c.h.b16 %v45
    %v69 = vunpack.c.l.b16 %v46
    %v70 = vunpack.c.l.b16 %v47
    %v71 = vunpack.c.h.b16 %v47
    %v72 = vunpack.c.l.b16 %v48
    %v73 = vunpack.c.l.b16 %v49
    %v74 = vunpack.c.h.b16 %v49
    %v75 = vunpack.c.l.b16 %v50
    %v76 = vpack.c.b16 %v67, %v64
    %v77 = vpack.c.b16 %v68, %v65
    %v78 = vpack.c.b16 %v69, %v66
    %v79 = vpack.c.b16 %v73, %v70
    %v80 = vpack.c.b16 %v74, %v71
    %v81 = vpack.c.b16 %v75, %v72
    %vm88 = vcmask 261120
    %v90 = vsel %vm88, %v55, 0
    %92 = vmatprep.subr.bf16.mxu0 %v77
    %93 = vmatpush1.bf16.msra.mxu0 %v76
    %94 = vmatprep.subr.bf16.mxu0 %v80
    %95 = vmatpush1.bf16.msra.mxu0 %v79
    %96 = vmatprep.subr.bf16.mxu0 0
    %97 = vmatpush1.bf16.msra.mxu0 0
    %98 = vmatprep.subr.bf16.mxu0 0
    %99 = vmatpush1.bf16.msra.mxu0 0
    %100 = vmatprep.subr.bf16.mxu0 0
    %101 = vmatpush1.bf16.msra.mxu0 0
    %102 = vmatprep.subr.bf16.mxu0 0
    %103 = vmatpush1.bf16.msra.mxu0 0
    %104 = vmatprep.subr.bf16.mxu0 0
    %105 = vmatpush1.bf16.msra.mxu0 0
    %106 = vmatprep.subr.bf16.mxu0 0
    %107 = vmatpush1.bf16.msra.mxu0 0
    %108 = vmatprep.subr.bf16.mxu0 0
    %109 = vmatpush1.bf16.msra.mxu0 0
    %110 = vmatprep.subr.bf16.mxu0 0
    %111 = vmatpush1.bf16.msra.mxu0 0
    %112 = vmatprep.subr.bf16.mxu0 0
    %113 = vmatpush1.bf16.msra.mxu0 0
    %114 = vmatprep.subr.bf16.mxu0 0
    %115 = vmatpush1.bf16.msra.mxu0 0
    %116 = vmatprep.subr.bf16.mxu0 0
    %117 = vmatpush1.bf16.msra.mxu0 0
    %118 = vmatprep.subr.bf16.mxu0 0
    %119 = vmatpush1.bf16.msra.mxu0 0
    %120 = vmatprep.subr.bf16.mxu0 0
    %121 = vmatpush1.bf16.msra.mxu0 0
    %122 = vmatprep.subr.bf16.mxu0 0
    %123 = vmatpush1.bf16.msra.mxu0 0
    %124 = vmatprep.mubr.bf16.mxu0 0
    %125 = vmatmul.mubr.bf16.gmra.mrb[0].mxu0 %v90
    %v126 = vpop.f32.mrb[0].mxu0
    %v127 = vadd.f32 0.0, %v126
    %v128 = vpop.f32.mrb[0].mxu0
    %v129 = vadd.f32 0.0, %v128
    %v130 = vpop.f32.mrb[0].mxu0
    %v131 = vadd.f32 0.0, %v130
    %v132 = vpop.f32.mrb[0].mxu0
    %v133 = vadd.f32 0.0, %v132
    %134 = vdwg.mxu0
    %135 = vmatprep.subr.bf16.mxu0 0
    %136 = vmatpush1.bf16.msra.mxu0 %v78
    %137 = vmatprep.subr.bf16.mxu0 0
    %138 = vmatpush1.bf16.msra.mxu0 %v81
    %139 = vmatprep.subr.bf16.mxu0 0
    %140 = vmatpush1.bf16.msra.mxu0 0
    %141 = vmatprep.subr.bf16.mxu0 0
    %142 = vmatpush1.bf16.msra.mxu0 0
    %143 = vmatprep.subr.bf16.mxu0 0
    %144 = vmatpush1.bf16.msra.mxu0 0
    %145 = vmatprep.subr.bf16.mxu0 0
    %146 = vmatpush1.bf16.msra.mxu0 0
    %147 = vmatprep.subr.bf16.mxu0 0
    %148 = vmatpush1.bf16.msra.mxu0 0
    %149 = vmatprep.subr.bf16.mxu0 0
    %150 = vmatpush1.bf16.msra.mxu0 0
    %151 = vmatprep.subr.bf16.mxu0 0
    %152 = vmatpush1.bf16.msra.mxu0 0
    %153 = vmatprep.subr.bf16.mxu0 0
    %154 = vmatpush1.bf16.msra.mxu0 0
    %155 = vmatprep.subr.bf16.mxu0 0
    %156 = vmatpush1.bf16.msra.mxu0 0
    %157 = vmatprep.subr.bf16.mxu0 0
    %158 = vmatpush1.bf16.msra.mxu0 0
    %159 = vmatprep.subr.bf16.mxu0 0
    %160 = vmatpush1.bf16.msra.mxu0 0
    %161 = vmatprep.subr.bf16.mxu0 0
    %162 = vmatpush1.bf16.msra.mxu0 0
    %163 = vmatprep.subr.bf16.mxu0 0
    %164 = vmatpush1.bf16.msra.mxu0 0
    %165 = vmatprep.subr.bf16.mxu0 0
    %166 = vmatpush1.bf16.msra.mxu0 0
    %167 = vmatprep.mubr.bf16.mxu0 0
    %168 = vmatmul.mubr.bf16.gmra.mrb[0].mxu0 %v90
    %v169 = vpop.f32.mrb[0].mxu0
    %v170 = vadd.f32 0.0, %v169
    %v171 = vpop.f32.mrb[0].mxu0
    %v172 = vpop.f32.mrb[0].mxu0
    %v173 = vadd.f32 0.0, %v172
    %v174 = vpop.f32.mrb[0].mxu0
    %175 = vdwg.mxu0
    %176 = vst [vmem:[#allocation7] sm:$0xff] %v127
    %177 = vst [vmem:[#allocation7 + $0x8] sm:$0xff] %v129
    %178 = vst [vmem:[#allocation7 + $0x10] sm:$0xff] %v170
    %179 = vst [vmem:[#allocation7 + $0x18] sm:$0xff] %v131
    %180 = vst [vmem:[#allocation7 + $0x20] sm:$0xff] %v133
    %181 = vst [vmem:[#allocation7 + $0x28] sm:$0xff] %v173
    // Predicated region
    $region18: #{tpu_custom_call.1} parent=1 // pred_check
      _
    $region19: #{tpu_custom_call.1} parent=1 // pred_check_branch
      %183 = sbr.rel (0) target = $region21
    $region20: #{tpu_custom_call.1} parent=1 // pred_region
      %s185 = ssub.s32 768, 768
      %186 = vsyncadd [#allocation4], %s185
      %s187 = sshll.u32 [#allocation7], 4
      %s188 = int_to_ptr.vmem [resolvable:$true] %s187
      %193 = dma.vmem_to_hbm [thread:$0]  %s188, 768, %s2, [#allocation4], 384, 384, 24
    $region21: #{tpu_custom_call.1} parent=1 // pred_fallthru
      _
    // Predicated region
    $region22: #{tpu_custom_call.1} parent=1 // pred_check
      _
    $region23: #{tpu_custom_call.1} parent=1 // pred_check_branch
      %195 = sbr.rel (0) target = $region25
    $region24: #{tpu_custom_call.1} parent=1 // pred_region
      %196 = dma.done [#allocation4], 768
    $region25: #{tpu_custom_call.1} parent=1 // pred_fallthru
      _
    %197 = vsyncpa [#allocation3], 1
    %198 = vsyncpa [#allocation6], 1
    %199 = vsyncpa [#allocation4], 1

</llo_original>
